<compile_context>
chip_gen: v5e
topology: v5e:2x2
jax: 0.10.0
libtpu: 0.0.40
codegen_flags: <defaults>
</compile_context>

<pallas_src>
import functools

import jax
import jax.numpy as jnp
from jax.experimental import pallas as pl
from jax.experimental.pallas import tpu as pltpu


def mhsa_kernel(x_ref, mask_ref, wqkv_ref, bqkv_ref, wfc_ref, bfc_ref, out_ref,
                *, num_heads, eps):
    Bt, L, H = x_ref.shape
    d_k = H // num_heads

    xb = x_ref[...]                               # (Bt, L, H) f32
    x2 = xb.reshape(Bt * L, H)                    # flatten batch rows into matmul M

    # Shared RMSNorm (per-branch gains are folded into the QKV weights).
    inv_rms = jax.lax.rsqrt(jnp.mean(x2 * x2, axis=-1, keepdims=True) + eps)
    xn = (x2 * inv_rms).astype(jnp.bfloat16)      # bf16 matmul operand

    # Fused Q|K|V projection: one (Bt*L, H) x (H, 3H) MXU matmul, f32 accumulation.
    qkv = jnp.dot(xn, wqkv_ref[...], preferred_element_type=jnp.float32) + bqkv_ref[...]

    # 1/sqrt(d_k) already folded into the Q weights/bias.
    q = qkv[:, 0 * H:1 * H].astype(jnp.bfloat16).reshape(Bt, L, H)
    k = qkv[:, 1 * H:2 * H].astype(jnp.bfloat16).reshape(Bt, L, H)
    v = qkv[:, 2 * H:3 * H].astype(jnp.bfloat16).reshape(Bt, L, H)

    mask = mask_ref[...]                          # (L, L) additive mask, f32

    # Per-head scaled-dot-product attention, batched over the batch block.
    head_outs = []
    for h in range(num_heads):                    # static unroll over heads
        sl = slice(h * d_k, (h + 1) * d_k)
        qh, kh, vh = q[:, :, sl], k[:, :, sl], v[:, :, sl]           # (Bt, L, d_k) bf16
        s = jnp.einsum('bld,bmd->blm', qh, kh,
                       preferred_element_type=jnp.float32) + mask    # (Bt, L, L) f32
        s = s - jnp.max(s, axis=-1, keepdims=True)                   # numerical stability
        p = jnp.exp(s)
        p = p * pl.reciprocal(jnp.sum(p, axis=-1, keepdims=True), approx=True)
        head_outs.append(jnp.einsum('blm,bmd->bld', p.astype(jnp.bfloat16), vh,
                                    preferred_element_type=jnp.float32))
    attn = jnp.concatenate(head_outs, axis=-1)    # (Bt, L, H) == 'b l (h k)'

    # Output projection on the flattened slab + fused residual add.
    attn2 = attn.reshape(Bt * L, H).astype(jnp.bfloat16)
    out = jnp.dot(attn2, wfc_ref[...], preferred_element_type=jnp.float32) + bfc_ref[...]
    out_ref[...] = (out.reshape(Bt, L, H) + xb).astype(out_ref.dtype)


def _pick_batch_block(B, L, max_rows=512):
    """Largest divisor of B such that block_b * L stays at a modest slab size."""
    bt = 1
    for cand in range(1, B + 1):
        if B % cand == 0 and cand * L <= max(max_rows, L):
            bt = cand
    return bt


def mhsa_forward(x, mask, params, *, num_heads, eps, block_b=None):
    B, L, H = x.shape
    d_k = H // num_heads
    scale = 1.0 / (d_k ** 0.5)
    if block_b is None:
        block_b = _pick_batch_block(B, L)
    assert B % block_b == 0

    # Algebraic folding (exact): rmsnorm(x, g) @ W == (x / rms) @ (g.T * W); the
    # 1/sqrt(d_k) score scale commutes into Wq and bq.  Fuse Q|K|V along out dim.
    wq = params["qn"].reshape(H, 1) * params["wq"] * scale
    wk = params["kn"].reshape(H, 1) * params["wk"]
    wv = params["vn"].reshape(H, 1) * params["wv"]
    w_qkv = jnp.concatenate([wq, wk, wv], axis=1).astype(jnp.bfloat16)          # (H, 3H)
    b_qkv = jnp.concatenate([params["bq"] * scale, params["bk"], params["bv"]],
                            axis=1).astype(jnp.float32)                         # (1, 3H)
    wfc = params["wfc"].astype(jnp.bfloat16)                                    # (H, H)
    bfc = params["bfc"].astype(jnp.float32)                                     # (1, H)

    kernel = functools.partial(mhsa_kernel, num_heads=num_heads, eps=eps)

    def const(shape):
        # Whole-array block with a constant index_map: stays resident across steps.
        return pl.BlockSpec(shape, lambda b: (0,) * len(shape))

    return pl.pallas_call(
        kernel,
        out_shape=jax.ShapeDtypeStruct((B, L, H), x.dtype),
        grid=(B // block_b,),
        in_specs=[
            pl.BlockSpec((block_b, L, H), lambda b: (b, 0, 0)),   # x: batch block
            const((L, L)),                                        # additive mask
            const((H, 3 * H)), const((1, 3 * H)),                 # fused QKV weight / bias
            const((H, H)), const((1, H)),                         # fc weight / bias
        ],
        out_specs=pl.BlockSpec((block_b, L, H), lambda b: (b, 0, 0)),
        compiler_params=pltpu.CompilerParams(dimension_semantics=("parallel",)),
    )(x, mask, w_qkv, b_qkv, wfc, bfc)


def mhsa_reference(x, mask, params, num_heads, eps):
    """Pure-JAX f32 reference mirroring the PyTorch forward."""
    B, L, H = x.shape
    d_k = H // num_heads

    def rmsnorm(y, w):
        rms = jnp.sqrt(jnp.mean(y * y, axis=-1, keepdims=True) + eps)
        return (y / rms) * w

    q = rmsnorm(x, params["qn"]) @ params["wq"] + params["bq"]
    k = rmsnorm(x, params["kn"]) @ params["wk"] + params["bk"]
    v = rmsnorm(x, params["vn"]) @ params["wv"] + params["bv"]
    q = q.reshape(B, L, num_heads, d_k).transpose(0, 2, 1, 3)
    k = k.reshape(B, L, num_heads, d_k).transpose(0, 2, 1, 3)
    v = v.reshape(B, L, num_heads, d_k).transpose(0, 2, 1, 3)
    scores = jnp.einsum("bhld,bhmd->bhlm", q, k) / (d_k ** 0.5) + mask
    p = jax.nn.softmax(scores, axis=-1)
    o = jnp.einsum("bhlm,bhmd->bhld", p, v)
    o = o.transpose(0, 2, 1, 3).reshape(B, L, H)
    return o @ params["wfc"] + params["bfc"] + x


if __name__ == "__main__":
    B, L, H, num_heads = 2, 16, 32, 4
    eps = 1e-6

    key = jax.random.PRNGKey(0)
    ks = jax.random.split(key, 12)
    s = 0.05
    x = jax.random.normal(ks[0], (B, L, H), jnp.float32)
    # additive mask: 0 for keep, -1e9 for masked-out positions
    mask = jnp.where(jax.random.uniform(ks[1], (L, L)) > 0.2, 0.0, -1e9).astype(jnp.float32)

    params = {
        # RMSNorm weights are ones at init (as in the PyTorch module)
        "qn": jnp.ones((1, H), jnp.float32),
        "kn": jnp.ones((1, H), jnp.float32),
        "vn": jnp.ones((1, H), jnp.float32),
        # Linear weights in (in, out) layout; biases as (1, H)
        "wq": jax.random.normal(ks[2], (H, H), jnp.float32) * s,
        "bq": jax.random.normal(ks[3], (1, H), jnp.float32) * s,
        "wk": jax.random.normal(ks[4], (H, H), jnp.float32) * s,
        "bk": jax.random.normal(ks[5], (1, H), jnp.float32) * s,
        "wv": jax.random.normal(ks[6], (H, H), jnp.float32) * s,
        "bv": jax.random.normal(ks[7], (1, H), jnp.float32) * s,
        "wfc": jax.random.normal(ks[8], (H, H), jnp.float32) * s,
        "bfc": jax.random.normal(ks[9], (1, H), jnp.float32) * s,
    }

    fwd = jax.jit(functools.partial(mhsa_forward, num_heads=num_heads, eps=eps))
    out = jax.block_until_ready(fwd(x, mask, params))

    ref = mhsa_reference(x, mask, params, num_heads, eps)
    assert out.shape == (B, L, H)
    # Looser tolerance: kernel uses bf16 matmul operands + approx reciprocal.
    assert jnp.allclose(out, ref, atol=2e-2, rtol=2e-2), "mismatch vs reference"

    print("KERNEL_OK")
</pallas_src>

<mosaic_0001>
module attributes {stable_mosaic.version = 11 : i64} {
  func.func @mhsa_kernel(%arg0: i32, %arg1: memref<2x16x32xf32, #tpu.memory_space<vmem>>, %arg2: memref<16x16xf32, #tpu.memory_space<vmem>>, %arg3: memref<32x96xbf16, #tpu.memory_space<vmem>>, %arg4: memref<1x96xf32, #tpu.memory_space<vmem>>, %arg5: memref<32x32xbf16, #tpu.memory_space<vmem>>, %arg6: memref<1x32xf32, #tpu.memory_space<vmem>>, %arg7: memref<2x16x32xf32, #tpu.memory_space<vmem>>) attributes {dimension_semantics = [#tpu.dimension_semantics<parallel>], iteration_bounds = array<i64: 1>, scalar_prefetch = 0 : i64, scratch_operands = 0 : i64, tpu.core_type = #tpu.core_type<tc>, window_params = [{transform_indices = @transform_0, window_bounds = array<i64: 2, 16, 32>}, {pipeline_mode = #tpu.pipeline_mode<synchronous>, transform_indices = @transform_1, window_bounds = array<i64: 16, 16>}, {pipeline_mode = #tpu.pipeline_mode<synchronous>, transform_indices = @transform_2, window_bounds = array<i64: 32, 96>}, {pipeline_mode = #tpu.pipeline_mode<synchronous>, transform_indices = @transform_3, window_bounds = array<i64: 1, 96>}, {pipeline_mode = #tpu.pipeline_mode<synchronous>, transform_indices = @transform_4, window_bounds = array<i64: 32, 32>}, {pipeline_mode = #tpu.pipeline_mode<synchronous>, transform_indices = @transform_5, window_bounds = array<i64: 1, 32>}, {transform_indices = @transform_6, window_bounds = array<i64: 2, 16, 32>}]} {
    %c0 = arith.constant 0 : index
    %c0_0 = arith.constant 0 : index
    %c0_1 = arith.constant 0 : index
    %0 = vector.load %arg1[%c0, %c0_0, %c0_1] : memref<2x16x32xf32, #tpu.memory_space<vmem>>, vector<2x16x32xf32>
    %1 = vector.shape_cast %0 : vector<2x16x32xf32> to vector<32x32xf32>
    %2 = arith.mulf %1, %1 : vector<32x32xf32>
    %cst = arith.constant dense<0.000000e+00> : vector<32xf32>
    %3 = vector.multi_reduction <add>, %2, %cst [1] : vector<32x32xf32> to vector<32xf32>
    %4 = vector.shape_cast %3 : vector<32xf32> to vector<32x1xf32>
    %cst_2 = arith.constant 3.200000e+01 : f32
    %5 = vector.broadcast %cst_2 : f32 to vector<32x1xf32>
    %6 = arith.divf %4, %5 : vector<32x1xf32>
    %cst_3 = arith.constant 9.99999997E-7 : f32
    %7 = vector.broadcast %cst_3 : f32 to vector<32x1xf32>
    %8 = arith.addf %6, %7 : vector<32x1xf32>
    %9 = math.rsqrt %8 : vector<32x1xf32>
    %10 = vector.broadcast %9 : vector<32x1xf32> to vector<32x32xf32>
    %11 = arith.mulf %1, %10 : vector<32x32xf32>
    %12 = arith.truncf %11 : vector<32x32xf32> to vector<32x32xbf16>
    %c0_4 = arith.constant 0 : index
    %c0_5 = arith.constant 0 : index
    %13 = vector.load %arg3[%c0_4, %c0_5] : memref<32x96xbf16, #tpu.memory_space<vmem>>, vector<32x96xbf16>
    %cst_6 = arith.constant dense<0.000000e+00> : vector<32x96xf32>
    %14 = tpu.matmul %12, %13, %cst_6 {dimension_numbers = #tpu.dot_dimension_numbers<[1], [0], [0], [1], [0, 0, 1, 1], [], []>} : vector<32x32xbf16>, vector<32x96xbf16>, vector<32x96xf32> -> vector<32x96xf32>
    %c0_7 = arith.constant 0 : index
    %c0_8 = arith.constant 0 : index
    %15 = vector.load %arg4[%c0_7, %c0_8] : memref<1x96xf32, #tpu.memory_space<vmem>>, vector<1x96xf32>
    %16 = vector.broadcast %15 : vector<1x96xf32> to vector<32x96xf32>
    %17 = arith.addf %14, %16 : vector<32x96xf32>
    %18 = vector.extract_strided_slice %17 {offsets = [0, 0], sizes = [32, 32], strides = [1, 1]} : vector<32x96xf32> to vector<32x32xf32>
    %19 = arith.truncf %18 : vector<32x32xf32> to vector<32x32xbf16>
    %20 = vector.shape_cast %19 : vector<32x32xbf16> to vector<2x16x32xbf16>
    %21 = vector.extract_strided_slice %17 {offsets = [0, 32], sizes = [32, 32], strides = [1, 1]} : vector<32x96xf32> to vector<32x32xf32>
    %22 = arith.truncf %21 : vector<32x32xf32> to vector<32x32xbf16>
    %23 = vector.shape_cast %22 : vector<32x32xbf16> to vector<2x16x32xbf16>
    %24 = vector.extract_strided_slice %17 {offsets = [0, 64], sizes = [32, 32], strides = [1, 1]} : vector<32x96xf32> to vector<32x32xf32>
    %25 = arith.truncf %24 : vector<32x32xf32> to vector<32x32xbf16>
    %26 = vector.shape_cast %25 : vector<32x32xbf16> to vector<2x16x32xbf16>
    %c0_9 = arith.constant 0 : index
    %c0_10 = arith.constant 0 : index
    %27 = vector.load %arg2[%c0_9, %c0_10] : memref<16x16xf32, #tpu.memory_space<vmem>>, vector<16x16xf32>
    %28 = vector.extract_strided_slice %20 {offsets = [0, 0, 0], sizes = [2, 16, 8], strides = [1, 1, 1]} : vector<2x16x32xbf16> to vector<2x16x8xbf16>
    %29 = vector.extract_strided_slice %23 {offsets = [0, 0, 0], sizes = [2, 16, 8], strides = [1, 1, 1]} : vector<2x16x32xbf16> to vector<2x16x8xbf16>
    %30 = vector.extract_strided_slice %26 {offsets = [0, 0, 0], sizes = [2, 16, 8], strides = [1, 1, 1]} : vector<2x16x32xbf16> to vector<2x16x8xbf16>
    "tpu.trace_start"() <{level = 10 : i32, message = "bld,bmd->blm"}> : () -> ()
    %cst_11 = arith.constant dense<0.000000e+00> : vector<2x16x16xf32>
    %31 = tpu.matmul %28, %29, %cst_11 {dimension_numbers = #tpu.dot_dimension_numbers<[2], [2], [1], [1], [0, 0, 0, 1, 1, 1], [0], [0]>} : vector<2x16x8xbf16>, vector<2x16x8xbf16>, vector<2x16x16xf32> -> vector<2x16x16xf32>
    "tpu.trace_stop"() : () -> ()
    %32 = vector.shape_cast %27 : vector<16x16xf32> to vector<1x16x16xf32>
    %33 = vector.broadcast %32 : vector<1x16x16xf32> to vector<2x16x16xf32>
    %34 = arith.addf %31, %33 : vector<2x16x16xf32>
    %cst_12 = arith.constant dense<0xFF800000> : vector<2x16xf32>
    %35 = vector.multi_reduction <maximumf>, %34, %cst_12 [2] : vector<2x16x16xf32> to vector<2x16xf32>
    %36 = vector.shape_cast %35 : vector<2x16xf32> to vector<2x16x1xf32>
    %37 = vector.broadcast %36 : vector<2x16x1xf32> to vector<2x16x16xf32>
    %38 = arith.subf %34, %37 : vector<2x16x16xf32>
    %39 = math.exp %38 : vector<2x16x16xf32>
    %cst_13 = arith.constant dense<0.000000e+00> : vector<2x16xf32>
    %40 = vector.multi_reduction <add>, %39, %cst_13 [2] : vector<2x16x16xf32> to vector<2x16xf32>
    %41 = vector.shape_cast %40 : vector<2x16xf32> to vector<2x16x1xf32>
    %42 = tpu.reciprocal %41 {approx = true} : vector<2x16x1xf32> -> vector<2x16x1xf32>
    %43 = vector.broadcast %42 : vector<2x16x1xf32> to vector<2x16x16xf32>
    %44 = arith.mulf %39, %43 : vector<2x16x16xf32>
    %45 = arith.truncf %44 : vector<2x16x16xf32> to vector<2x16x16xbf16>
    "tpu.trace_start"() <{level = 10 : i32, message = "blm,bmd->bld"}> : () -> ()
    %cst_14 = arith.constant dense<0.000000e+00> : vector<2x16x8xf32>
    %46 = tpu.matmul %45, %30, %cst_14 {dimension_numbers = #tpu.dot_dimension_numbers<[2], [1], [1], [2], [0, 0, 0, 1, 1, 2], [0], [0]>} : vector<2x16x16xbf16>, vector<2x16x8xbf16>, vector<2x16x8xf32> -> vector<2x16x8xf32>
    "tpu.trace_stop"() : () -> ()
    %47 = vector.extract_strided_slice %20 {offsets = [0, 0, 8], sizes = [2, 16, 8], strides = [1, 1, 1]} : vector<2x16x32xbf16> to vector<2x16x8xbf16>
    %48 = vector.extract_strided_slice %23 {offsets = [0, 0, 8], sizes = [2, 16, 8], strides = [1, 1, 1]} : vector<2x16x32xbf16> to vector<2x16x8xbf16>
    %49 = vector.extract_strided_slice %26 {offsets = [0, 0, 8], sizes = [2, 16, 8], strides = [1, 1, 1]} : vector<2x16x32xbf16> to vector<2x16x8xbf16>
    "tpu.trace_start"() <{level = 10 : i32, message = "bld,bmd->blm"}> : () -> ()
    %cst_15 = arith.constant dense<0.000000e+00> : vector<2x16x16xf32>
    %50 = tpu.matmul %47, %48, %cst_15 {dimension_numbers = #tpu.dot_dimension_numbers<[2], [2], [1], [1], [0, 0, 0, 1, 1, 1], [0], [0]>} : vector<2x16x8xbf16>, vector<2x16x8xbf16>, vector<2x16x16xf32> -> vector<2x16x16xf32>
    "tpu.trace_stop"() : () -> ()
    %51 = vector.shape_cast %27 : vector<16x16xf32> to vector<1x16x16xf32>
    %52 = vector.broadcast %51 : vector<1x16x16xf32> to vector<2x16x16xf32>
    %53 = arith.addf %50, %52 : vector<2x16x16xf32>
    %cst_16 = arith.constant dense<0xFF800000> : vector<2x16xf32>
    %54 = vector.multi_reduction <maximumf>, %53, %cst_16 [2] : vector<2x16x16xf32> to vector<2x16xf32>
    %55 = vector.shape_cast %54 : vector<2x16xf32> to vector<2x16x1xf32>
    %56 = vector.broadcast %55 : vector<2x16x1xf32> to vector<2x16x16xf32>
    %57 = arith.subf %53, %56 : vector<2x16x16xf32>
    %58 = math.exp %57 : vector<2x16x16xf32>
    %cst_17 = arith.constant dense<0.000000e+00> : vector<2x16xf32>
    %59 = vector.multi_reduction <add>, %58, %cst_17 [2] : vector<2x16x16xf32> to vector<2x16xf32>
    %60 = vector.shape_cast %59 : vector<2x16xf32> to vector<2x16x1xf32>
    %61 = tpu.reciprocal %60 {approx = true} : vector<2x16x1xf32> -> vector<2x16x1xf32>
    %62 = vector.broadcast %61 : vector<2x16x1xf32> to vector<2x16x16xf32>
    %63 = arith.mulf %58, %62 : vector<2x16x16xf32>
    %64 = arith.truncf %63 : vector<2x16x16xf32> to vector<2x16x16xbf16>
    "tpu.trace_start"() <{level = 10 : i32, message = "blm,bmd->bld"}> : () -> ()
    %cst_18 = arith.constant dense<0.000000e+00> : vector<2x16x8xf32>
    %65 = tpu.matmul %64, %49, %cst_18 {dimension_numbers = #tpu.dot_dimension_numbers<[2], [1], [1], [2], [0, 0, 0, 1, 1, 2], [0], [0]>} : vector<2x16x16xbf16>, vector<2x16x8xbf16>, vector<2x16x8xf32> -> vector<2x16x8xf32>
    "tpu.trace_stop"() : () -> ()
    %66 = vector.extract_strided_slice %20 {offsets = [0, 0, 16], sizes = [2, 16, 8], strides = [1, 1, 1]} : vector<2x16x32xbf16> to vector<2x16x8xbf16>
    %67 = vector.extract_strided_slice %23 {offsets = [0, 0, 16], sizes = [2, 16, 8], strides = [1, 1, 1]} : vector<2x16x32xbf16> to vector<2x16x8xbf16>
    %68 = vector.extract_strided_slice %26 {offsets = [0, 0, 16], sizes = [2, 16, 8], strides = [1, 1, 1]} : vector<2x16x32xbf16> to vector<2x16x8xbf16>
    "tpu.trace_start"() <{level = 10 : i32, message = "bld,bmd->blm"}> : () -> ()
    %cst_19 = arith.constant dense<0.000000e+00> : vector<2x16x16xf32>
    %69 = tpu.matmul %66, %67, %cst_19 {dimension_numbers = #tpu.dot_dimension_numbers<[2], [2], [1], [1], [0, 0, 0, 1, 1, 1], [0], [0]>} : vector<2x16x8xbf16>, vector<2x16x8xbf16>, vector<2x16x16xf32> -> vector<2x16x16xf32>
    "tpu.trace_stop"() : () -> ()
    %70 = vector.shape_cast %27 : vector<16x16xf32> to vector<1x16x16xf32>
    %71 = vector.broadcast %70 : vector<1x16x16xf32> to vector<2x16x16xf32>
    %72 = arith.addf %69, %71 : vector<2x16x16xf32>
    %cst_20 = arith.constant dense<0xFF800000> : vector<2x16xf32>
    %73 = vector.multi_reduction <maximumf>, %72, %cst_20 [2] : vector<2x16x16xf32> to vector<2x16xf32>
    %74 = vector.shape_cast %73 : vector<2x16xf32> to vector<2x16x1xf32>
    %75 = vector.broadcast %74 : vector<2x16x1xf32> to vector<2x16x16xf32>
    %76 = arith.subf %72, %75 : vector<2x16x16xf32>
    %77 = math.exp %76 : vector<2x16x16xf32>
    %cst_21 = arith.constant dense<0.000000e+00> : vector<2x16xf32>
    %78 = vector.multi_reduction <add>, %77, %cst_21 [2] : vector<2x16x16xf32> to vector<2x16xf32>
    %79 = vector.shape_cast %78 : vector<2x16xf32> to vector<2x16x1xf32>
    %80 = tpu.reciprocal %79 {approx = true} : vector<2x16x1xf32> -> vector<2x16x1xf32>
    %81 = vector.broadcast %80 : vector<2x16x1xf32> to vector<2x16x16xf32>
    %82 = arith.mulf %77, %81 : vector<2x16x16xf32>
    %83 = arith.truncf %82 : vector<2x16x16xf32> to vector<2x16x16xbf16>
    "tpu.trace_start"() <{level = 10 : i32, message = "blm,bmd->bld"}> : () -> ()
    %cst_22 = arith.constant dense<0.000000e+00> : vector<2x16x8xf32>
    %84 = tpu.matmul %83, %68, %cst_22 {dimension_numbers = #tpu.dot_dimension_numbers<[2], [1], [1], [2], [0, 0, 0, 1, 1, 2], [0], [0]>} : vector<2x16x16xbf16>, vector<2x16x8xbf16>, vector<2x16x8xf32> -> vector<2x16x8xf32>
    "tpu.trace_stop"() : () -> ()
    %85 = vector.extract_strided_slice %20 {offsets = [0, 0, 24], sizes = [2, 16, 8], strides = [1, 1, 1]} : vector<2x16x32xbf16> to vector<2x16x8xbf16>
    %86 = vector.extract_strided_slice %23 {offsets = [0, 0, 24], sizes = [2, 16, 8], strides = [1, 1, 1]} : vector<2x16x32xbf16> to vector<2x16x8xbf16>
    %87 = vector.extract_strided_slice %26 {offsets = [0, 0, 24], sizes = [2, 16, 8], strides = [1, 1, 1]} : vector<2x16x32xbf16> to vector<2x16x8xbf16>
    "tpu.trace_start"() <{level = 10 : i32, message = "bld,bmd->blm"}> : () -> ()
    %cst_23 = arith.constant dense<0.000000e+00> : vector<2x16x16xf32>
    %88 = tpu.matmul %85, %86, %cst_23 {dimension_numbers = #tpu.dot_dimension_numbers<[2], [2], [1], [1], [0, 0, 0, 1, 1, 1], [0], [0]>} : vector<2x16x8xbf16>, vector<2x16x8xbf16>, vector<2x16x16xf32> -> vector<2x16x16xf32>
    "tpu.trace_stop"() : () -> ()
    %89 = vector.shape_cast %27 : vector<16x16xf32> to vector<1x16x16xf32>
    %90 = vector.broadcast %89 : vector<1x16x16xf32> to vector<2x16x16xf32>
    %91 = arith.addf %88, %90 : vector<2x16x16xf32>
    %cst_24 = arith.constant dense<0xFF800000> : vector<2x16xf32>
    %92 = vector.multi_reduction <maximumf>, %91, %cst_24 [2] : vector<2x16x16xf32> to vector<2x16xf32>
    %93 = vector.shape_cast %92 : vector<2x16xf32> to vector<2x16x1xf32>
    %94 = vector.broadcast %93 : vector<2x16x1xf32> to vector<2x16x16xf32>
    %95 = arith.subf %91, %94 : vector<2x16x16xf32>
    %96 = math.exp %95 : vector<2x16x16xf32>
    %cst_25 = arith.constant dense<0.000000e+00> : vector<2x16xf32>
    %97 = vector.multi_reduction <add>, %96, %cst_25 [2] : vector<2x16x16xf32> to vector<2x16xf32>
    %98 = vector.shape_cast %97 : vector<2x16xf32> to vector<2x16x1xf32>
    %99 = tpu.reciprocal %98 {approx = true} : vector<2x16x1xf32> -> vector<2x16x1xf32>
    %100 = vector.broadcast %99 : vector<2x16x1xf32> to vector<2x16x16xf32>
    %101 = arith.mulf %96, %100 : vector<2x16x16xf32>
    %102 = arith.truncf %101 : vector<2x16x16xf32> to vector<2x16x16xbf16>
    "tpu.trace_start"() <{level = 10 : i32, message = "blm,bmd->bld"}> : () -> ()
    %cst_26 = arith.constant dense<0.000000e+00> : vector<2x16x8xf32>
    %103 = tpu.matmul %102, %87, %cst_26 {dimension_numbers = #tpu.dot_dimension_numbers<[2], [1], [1], [2], [0, 0, 0, 1, 1, 2], [0], [0]>} : vector<2x16x16xbf16>, vector<2x16x8xbf16>, vector<2x16x8xf32> -> vector<2x16x8xf32>
    "tpu.trace_stop"() : () -> ()
    %104 = tpu.concatenate %46, %65, %84, %103 in 2 : vector<2x16x8xf32>, vector<2x16x8xf32>, vector<2x16x8xf32>, vector<2x16x8xf32> -> vector<2x16x32xf32>
    %105 = vector.shape_cast %104 : vector<2x16x32xf32> to vector<32x32xf32>
    %106 = arith.truncf %105 : vector<32x32xf32> to vector<32x32xbf16>
    %c0_27 = arith.constant 0 : index
    %c0_28 = arith.constant 0 : index
    %107 = vector.load %arg5[%c0_27, %c0_28] : memref<32x32xbf16, #tpu.memory_space<vmem>>, vector<32x32xbf16>
    %cst_29 = arith.constant dense<0.000000e+00> : vector<32x32xf32>
    %108 = tpu.matmul %106, %107, %cst_29 {dimension_numbers = #tpu.dot_dimension_numbers<[1], [0], [0], [1], [0, 0, 1, 1], [], []>} : vector<32x32xbf16>, vector<32x32xbf16>, vector<32x32xf32> -> vector<32x32xf32>
    %c0_30 = arith.constant 0 : index
    %c0_31 = arith.constant 0 : index
    %109 = vector.load %arg6[%c0_30, %c0_31] : memref<1x32xf32, #tpu.memory_space<vmem>>, vector<1x32xf32>
    %110 = vector.broadcast %109 : vector<1x32xf32> to vector<32x32xf32>
    %111 = arith.addf %108, %110 : vector<32x32xf32>
    %112 = vector.shape_cast %111 : vector<32x32xf32> to vector<2x16x32xf32>
    %113 = arith.addf %112, %0 : vector<2x16x32xf32>
    %c0_32 = arith.constant 0 : index
    %c0_33 = arith.constant 0 : index
    %c0_34 = arith.constant 0 : index
    %114 = vector.load %arg7[%c0_32, %c0_33, %c0_34] : memref<2x16x32xf32, #tpu.memory_space<vmem>>, vector<2x16x32xf32>
    tpu.vector_store %arg7[%c0_32, %c0_33, %c0_34], %113 {strides = array<i32>} : memref<2x16x32xf32, #tpu.memory_space<vmem>>, vector<2x16x32xf32>,
    return
  }
  func.func @transform_0(%arg0: i32) -> (i32, i32, i32) {
    %c0_i32 = arith.constant 0 : i32
    %c0_i32_0 = arith.constant 0 : i32
    %c0_i32_1 = arith.constant 0 : i32
    return %arg0, %c0_i32, %c0_i32_0 : i32, i32, i32
  }
  func.func @transform_1(%arg0: i32) -> (i32, i32) {
    %c0_i32 = arith.constant 0 : i32
    %c0_i32_0 = arith.constant 0 : i32
    %c0_i32_1 = arith.constant 0 : i32
    return %c0_i32, %c0_i32_0 : i32, i32
  }
  func.func @transform_2(%arg0: i32) -> (i32, i32) {
    %c0_i32 = arith.constant 0 : i32
    %c0_i32_0 = arith.constant 0 : i32
    %c0_i32_1 = arith.constant 0 : i32
    return %c0_i32, %c0_i32_0 : i32, i32
  }
  func.func @transform_3(%arg0: i32) -> (i32, i32) {
    %c0_i32 = arith.constant 0 : i32
    %c0_i32_0 = arith.constant 0 : i32
    %c0_i32_1 = arith.constant 0 : i32
    return %c0_i32, %c0_i32_0 : i32, i32
  }
  func.func @transform_4(%arg0: i32) -> (i32, i32) {
    %c0_i32 = arith.constant 0 : i32
    %c0_i32_0 = arith.constant 0 : i32
    %c0_i32_1 = arith.constant 0 : i32
    return %c0_i32, %c0_i32_0 : i32, i32
  }
  func.func @transform_5(%arg0: i32) -> (i32, i32) {
    %c0_i32 = arith.constant 0 : i32
    %c0_i32_0 = arith.constant 0 : i32
    %c0_i32_1 = arith.constant 0 : i32
    return %c0_i32, %c0_i32_0 : i32, i32
  }
  func.func @transform_6(%arg0: i32) -> (i32, i32, i32) {
    %c0_i32 = arith.constant 0 : i32
    %c0_i32_0 = arith.constant 0 : i32
    %c0_i32_1 = arith.constant 0 : i32
    return %arg0, %c0_i32, %c0_i32_0 : i32, i32, i32
  }
}

</mosaic_0001>

<llo_original>
// kernel: mhsa_forward.1
$region0: #{mhsa_forward.1}
  #allocation0 [shape = 'u32[]', space=smem, size = 0x4, offset = 0x4, fixed_abs, tag = 'smem constant byte address 0x4 - core index']
  #allocation1 [shape = 'u32[72,128]{1,0:T(1,128)}', space=vmem, size = 0x9000, scoped, tag = 'internal scratch']
  %s0 = inlined_call_operand.vmem [shape: f32[2,16,32], index: 0, kind: input, shape index: {}]
  %s1 = inlined_call_operand.vmem [shape: f32[16,16], index: 1, kind: input, shape index: {}]
  %s2 = inlined_call_operand.vmem [shape: bf16[32,96], index: 2, kind: input, shape index: {}]
  %s3 = inlined_call_operand.vmem [shape: f32[1,96], index: 3, kind: input, shape index: {}]
  %s4 = inlined_call_operand.vmem [shape: bf16[32,32], index: 4, kind: input, shape index: {}]
  %s5 = inlined_call_operand.vmem [shape: f32[1,32], index: 5, kind: input, shape index: {}]
  %s6 = inlined_call_operand.hbm [shape: f32[2,16,32], index: 6, kind: output, shape index: {}]
  %s7 = sld [smem:[#allocation0]]
  $region34: #{mhsa_forward.1} parent=0
    _
  %s9 = ssub.s32 1, %s7
  %s10 = scalar_select 0, %s9, %s7
  $region1: #{mhsa_forward.1} parent=0
    #allocation2 [shape = 'u8[16384]{0}', space=vmem, size = 0x4000, scoped, tag = 'output window, operand 0, single buffered']
    #allocation3 [shape = 's32[1]{0}', space=sflag, size = 0x4, scoped, tag = 'scoped memory for mhsa_forward.1']
    %11 = vsyncpa [#allocation3], 0
    // Predicated region
    $region2: #{mhsa_forward.1} parent=1 // pred_check
      _
    $region3: #{mhsa_forward.1} parent=1 // pred_check_branch
      %13 = sbr.rel (0) target = $region5
    $region4: #{mhsa_forward.1} parent=1 // pred_region
      _
    $region5: #{mhsa_forward.1} parent=1 // pred_fallthru
      _
    // Predicated region
    $region6: #{mhsa_forward.1} parent=1 // pred_check
      _
    $region7: #{mhsa_forward.1} parent=1 // pred_check_branch
      %15 = sbr.rel (0) target = $region9
    $region8: #{mhsa_forward.1} parent=1 // pred_region
      _
    $region9: #{mhsa_forward.1} parent=1 // pred_fallthru
      _
    // Predicated region
    $region10: #{mhsa_forward.1} parent=1 // pred_check
      _
    $region11: #{mhsa_forward.1} parent=1 // pred_check_branch
      %17 = sbr.rel (0) target = $region13
    $region12: #{mhsa_forward.1} parent=1 // pred_region
      _
    $region13: #{mhsa_forward.1} parent=1 // pred_fallthru
      _
    // Predicated region
    $region14: #{mhsa_forward.1} parent=1 // pred_check
      _
    $region15: #{mhsa_forward.1} parent=1 // pred_check_branch
      %19 = sbr.rel (0) target = $region17
    $region16: #{mhsa_forward.1} parent=1 // pred_region
      _
    $region17: #{mhsa_forward.1} parent=1 // pred_fallthru
      _
    // Predicated region
    $region18: #{mhsa_forward.1} parent=1 // pred_check
      _
    $region19: #{mhsa_forward.1} parent=1 // pred_check_branch
      %21 = sbr.rel (0) target = $region21
    $region20: #{mhsa_forward.1} parent=1 // pred_region
      _
    $region21: #{mhsa_forward.1} parent=1 // pred_fallthru
      _
    // Predicated region
    $region22: #{mhsa_forward.1} parent=1 // pred_check
      _
    $region23: #{mhsa_forward.1} parent=1 // pred_check_branch
      %23 = sbr.rel (0) target = $region25
    $region24: #{mhsa_forward.1} parent=1 // pred_region
      _
    $region25: #{mhsa_forward.1} parent=1 // pred_fallthru
      _
    %v25 = vld [vmem:[%s0] sm:$0xff]
    %v26 = vld [vmem:[%s0 + $0x8] sm:$0xff]
    %v27 = vld [vmem:[%s0 + $0x10] sm:$0xff]
    %v28 = vld [vmem:[%s0 + $0x18] sm:$0xff]
    %v29 = vmul.f32 %v25, %v25
    %v30 = vmul.f32 %v26, %v26
    %v31 = vmul.f32 %v27, %v27
    %v32 = vmul.f32 %v28, %v28
    %vm33 = vcmask 261120
    %v34 = vsel %vm33, %v29, 0.0
    %35 = vadd.xlane.f32.xlu0 %v34
    %v36 = vpop.xlane.xlu0 %35
    %v37 = vsel %vm33, %v30, 0.0
    %38 = vadd.xlane.f32.xlu0 %v37
    %v39 = vpop.xlane.xlu0 %38
    %v40 = vsel %vm33, %v31, 0.0
    %41 = vadd.xlane.f32.xlu0 %v40
    %v42 = vpop.xlane.xlu0 %41
    %v43 = vsel %vm33, %v32, 0.0
    %44 = vadd.xlane.f32.xlu0 %v43
    %v45 = vpop.xlane.xlu0 %44
    %v46 = vrcp.pop 32.0
    %v47 = vmul.f32 32.0, %v46
    %v48 = vsub.f32 1.0, %v47
    %v49 = vmul.f32 %v46, %v48
    %v50 = vadd.f32 %v46, %v49
    %vm51 = vweird.f32 %v46
    %v52 = vsel %vm51, %v46, %v50
    %v53 = vmul.f32 %v36, %v52
    %v54 = vmul.f32 %v39, %v52
    %v55 = vmul.f32 %v42, %v52
    %v56 = vmul.f32 %v45, %v52
    %v57 = vadd.f32 %v53, 1e-06
    %v58 = vadd.f32 %v54, 1e-06
    %v59 = vadd.f32 %v55, 1e-06
    %v60 = vadd.f32 %v56, 1e-06
    %v61 = vrsqrt.pop %v57
    %v62 = vmul.f32 %v61, %v57
    %v63 = vmul.f32 %v62, %v61
    %v64 = vmul.f32 0.5, %v63
    %v65 = vsub.f32 1.5, %v64
    %v66 = vmul.f32 %v61, %v65
    %vm67 = vweird.f32 %v57
    %vm68 = vweird.f32 %v61
    %vm69 = vmor %vm67, %vm68
    %v70 = vsel %vm69, %v61, %v66
    %v71 = vrsqrt.pop %v58
    %v72 = vmul.f32 %v71, %v58
    %v73 = vmul.f32 %v72, %v71
    %v74 = vmul.f32 0.5, %v73
    %v75 = vsub.f32 1.5, %v74
    %v76 = vmul.f32 %v71, %v75
    %vm77 = vweird.f32 %v58
    %vm78 = vweird.f32 %v71
    %vm79 = vmor %vm77, %vm78
    %v80 = vsel %vm79, %v71, %v76
    %v81 = vrsqrt.pop %v59
    %v82 = vmul.f32 %v81, %v59
    %v83 = vmul.f32 %v82, %v81
    %v84 = vmul.f32 0.5, %v83
    %v85 = vsub.f32 1.5, %v84
    %v86 = vmul.f32 %v81, %v85
    %vm87 = vweird.f32 %v59
    %vm88 = vweird.f32 %v81
    %vm89 = vmor %vm87, %vm88
    %v90 = vsel %vm89, %v81, %v86
    %v91 = vrsqrt.pop %v60
    %v92 = vmul.f32 %v91, %v60
    %v93 = vmul.f32 %v92, %v91
    %v94 = vmul.f32 0.5, %v93
    %v95 = vsub.f32 1.5, %v94
    %v96 = vmul.f32 %v91, %v95
    %vm97 = vweird.f32 %v60
    %vm98 = vweird.f32 %v91
    %vm99 = vmor %vm97, %vm98
    %v100 = vsel %vm99, %v91, %v96
    %v101 = vmul.f32 %v25, %v70
    %v102 = vmul.f32 %v26, %v80
    %v103 = vmul.f32 %v27, %v90
    %v104 = vmul.f32 %v28, %v100
    %v105 = vpack.c.bf16 %v102, %v101
    %v106 = vpack.c.bf16 %v104, %v103
    %v107 = vld [vmem:[%s2] sm:$0xf]
    %v108 = vld [vmem:[%s2 + $0x4] sm:$0xf]
    %v109 = vld [vmem:[%s2 + $0x8] sm:$0xf]
    %v110 = vld [vmem:[%s2 + $0xc] sm:$0xf]
    %v111 = vld [vmem:[%s3] sm:$0x1]
    %v113 = vperm.slane %v111, 0
    %v119 = vunpack.c.l.b16 %v107
    %v120 = vunpack.c.l.b16 %v108
    %v121 = vunpack.c.l.b16 %v109
    %v122 = vunpack.c.l.b16 %v110
    %v123 = vpack.c.b16 %v120, %v119
    %v124 = vpack.c.b16 %v122, %v121
    %v128 = vsel %vm33, %v105, 0
    %v131 = vsel %vm33, %v106, 0
    %133 = vmatpush.bf16.msra.mxu0 0
    %134 = vmatpush.bf16.msra.mxu0 0
    %135 = vmatpush.bf16.msra.mxu0 0
    %136 = vmatpush.bf16.msra.mxu0 0
    %137 = vmatpush.bf16.msra.mxu0 0
    %138 = vmatpush.bf16.msra.mxu0 0
    %139 = vmatpush.bf16.msra.mxu0 %v124
    %140 = vmatpush.bf16.msra.mxu0 %v123
    %141 = vmatmul.bf16.gmra.mxu0 %v128
    %v142 = vpop.f32.mrf.mxu0
    %v143 = vadd.f32 %v113, %v142
    %v144 = vpop.f32.mrf.mxu0
    %v145 = vadd.f32 %v113, %v144
    %146 = vmatmul.bf16.gmra.mxu0 %v131
    %v147 = vpop.f32.mrf.mxu0
    %v148 = vadd.f32 %v113, %v147
    %v149 = vpop.f32.mrf.mxu0
    %v150 = vadd.f32 %v113, %v149
    %151 = vdwg.mxu0
    %v152 = vpack.c.bf16 %v143, %v143
    %v153 = vpack.c.bf16 %v145, %v145
    %v154 = vpack.c.bf16 %v148, %v148
    %v155 = vpack.c.bf16 %v150, %v150
    %v156 = vld [vmem:[%s1] sm:$0xff]
    %v157 = vld [vmem:[%s1 + $0x8] sm:$0xff]
    %v160 = vunpack.c.l.b16 %v152
    %v161 = vunpack.c.l.b16 %v153
    %v162 = vpack.c.b16 %v161, %v160
    %163 = vrot.lane.b32.xlu0 %v162, 96
    %v164 = vpop.permute.xlu0 %163
    %vm165 = vcmask 64512
    %v167 = vsel %vm165, %v162, 0
    %v170 = vsel %vm165, %v164, 0
    %172 = vmatpush.bf16.xpose.msra.mxu0 0
    %173 = vmatpush.bf16.xpose.msra.mxu0 0
    %174 = vmatpush.bf16.xpose.msra.mxu0 0
    %175 = vmatpush.bf16.xpose.msra.mxu0 0
    %176 = vmatpush.bf16.xpose.msra.mxu0 0
    %177 = vmatpush.bf16.xpose.msra.mxu0 0
    %178 = vmatpush.bf16.xpose.msra.mxu0 0
    %179 = vmatpush.bf16.xpose.msra.mxu0 %v170
    %180 = vmatmul.bf16.gmra.mxu0 %v167
    %v181 = vpop.f32.mrf.mxu0
    %v182 = vadd.f32 %v156, %v181
    %v183 = vpop.f32.mrf.mxu0
    %v184 = vadd.f32 %v157, %v183
    %185 = vdwg.mxu0
    %v188 = vunpack.c.l.b16 %v154
    %v189 = vunpack.c.l.b16 %v155
    %v190 = vpack.c.b16 %v189, %v188
    %191 = vrot.lane.b32.xlu0 %v190, 96
    %v192 = vpop.permute.xlu0 %191
    %v194 = vsel %vm165, %v190, 0
    %v197 = vsel %vm165, %v192, 0
    %199 = vmatpush.bf16.xpose.msra.mxu0 0
    %200 = vmatpush.bf16.xpose.msra.mxu0 0
    %201 = vmatpush.bf16.xpose.msra.mxu0 0
    %202 = vmatpush.bf16.xpose.msra.mxu0 0
    %203 = vmatpush.bf16.xpose.msra.mxu0 0
    %204 = vmatpush.bf16.xpose.msra.mxu0 0
    %205 = vmatpush.bf16.xpose.msra.mxu0 0
    %206 = vmatpush.bf16.xpose.msra.mxu0 %v197
    %207 = vmatmul.bf16.gmra.mxu0 %v194
    %v208 = vpop.f32.mrf.mxu0
    %v209 = vadd.f32 %v156, %v208
    %v210 = vpop.f32.mrf.mxu0
    %v211 = vadd.f32 %v157, %v210
    %212 = vdwg.mxu0
    %vm213 = vcmask 130048
    %v214 = vsel %vm213, %v182, -inf
    %215 = vmax.xlane.f32.xlu0 %v214
    %v216 = vpop.xlane.xlu0 %215
    %v217 = vsel %vm213, %v184, -inf
    %218 = vmax.xlane.f32.xlu0 %v217
    %v219 = vpop.xlane.xlu0 %218
    %v220 = vsel %vm213, %v209, -inf
    %221 = vmax.xlane.f32.xlu0 %v220
    %v222 = vpop.xlane.xlu0 %221
    %v223 = vsel %vm213, %v211, -inf
    %224 = vmax.xlane.f32.xlu0 %v223
    %v225 = vpop.xlane.xlu0 %224
    %v226 = vsub.f32 %v182, %v216
    %v227 = vsub.f32 %v184, %v219
    %v228 = vsub.f32 %v209, %v222
    %v229 = vsub.f32 %v211, %v225
    %v230 = vmul.f32 %v226, 1.442695
    %v231 = vpow.pop %v230
    %v232 = vmul.f32 %v227, 1.442695
    %v233 = vpow.pop %v232
    %v234 = vmul.f32 %v228, 1.442695
    %v235 = vpow.pop %v234
    %v236 = vmul.f32 %v229, 1.442695
    %v237 = vpow.pop %v236
    %v238 = vsel %vm213, %v231, 0.0
    %239 = vadd.xlane.f32.xlu0 %v238
    %v240 = vpop.xlane.xlu0 %239
    %v241 = vsel %vm213, %v233, 0.0
    %242 = vadd.xlane.f32.xlu0 %v241
    %v243 = vpop.xlane.xlu0 %242
    %v244 = vsel %vm213, %v235, 0.0
    %245 = vadd.xlane.f32.xlu0 %v244
    %v246 = vpop.xlane.xlu0 %245
    %v247 = vsel %vm213, %v237, 0.0
    %248 = vadd.xlane.f32.xlu0 %v247
    %v249 = vpop.xlane.xlu0 %248
    %v250 = vrcp.pop %v240
    %v251 = vrcp.pop %v243
    %v252 = vrcp.pop %v246
    %v253 = vrcp.pop %v249
    %v254 = vmul.f32 %v231, %v250
    %v255 = vmul.f32 %v233, %v251
    %v256 = vmul.f32 %v235, %v252
    %v257 = vmul.f32 %v237, %v253
    %v258 = vpack.c.bf16 %v254, %v254
    %v259 = vpack.c.bf16 %v255, %v255
    %v260 = vpack.c.bf16 %v256, %v256
    %v261 = vpack.c.bf16 %v257, %v257
    %v264 = vunpack.c.l.b16 %v258
    %v265 = vunpack.c.l.b16 %v259
    %v266 = vpack.c.b16 %v265, %v264
    %267 = vrot.lane.b32.xlu0 %v162, 64
    %v268 = vpop.permute.xlu0 %267
    %v271 = vsel %vm213, %v266, 0
    %273 = vmatpush.bf16.msra.mxu0 0
    %274 = vmatpush.bf16.msra.mxu0 0
    %275 = vmatpush.bf16.msra.mxu0 0
    %276 = vmatpush.bf16.msra.mxu0 0
    %277 = vmatpush.bf16.msra.mxu0 0
    %278 = vmatpush.bf16.msra.mxu0 0
    %279 = vmatpush.bf16.msra.mxu0 0
    %280 = vmatpush.bf16.msra.mxu0 %v268
    %281 = vmatmul.bf16.gmra.mxu0 %v271
    %v282 = vpop.f32.mrf.mxu0
    %v283 = vadd.f32 0.0, %v282
    %v284 = vpop.f32.mrf.mxu0
    %v285 = vadd.f32 0.0, %v284
    %286 = vdwg.mxu0
    %v289 = vunpack.c.l.b16 %v260
    %v290 = vunpack.c.l.b16 %v261
    %v291 = vpack.c.b16 %v290, %v289
    %292 = vrot.lane.b32.xlu0 %v190, 64
    %v293 = vpop.permute.xlu0 %292
    %v296 = vsel %vm213, %v291, 0
    %298 = vmatpush.bf16.msra.mxu0 0
    %299 = vmatpush.bf16.msra.mxu0 0
    %300 = vmatpush.bf16.msra.mxu0 0
    %301 = vmatpush.bf16.msra.mxu0 0
    %302 = vmatpush.bf16.msra.mxu0 0
    %303 = vmatpush.bf16.msra.mxu0 0
    %304 = vmatpush.bf16.msra.mxu0 0
    %305 = vmatpush.bf16.msra.mxu0 %v293
    %306 = vmatmul.bf16.gmra.mxu0 %v296
    %v307 = vpop.f32.mrf.mxu0
    %v308 = vadd.f32 0.0, %v307
    %v309 = vpop.f32.mrf.mxu0
    %v310 = vadd.f32 0.0, %v309
    %311 = vdwg.mxu0
    %312 = vrot.lane.b32.xlu0 %v162, 120
    %v313 = vpop.permute.xlu0 %312
    %314 = vrot.lane.b32.xlu0 %v162, 88
    %v315 = vpop.permute.xlu0 %314
    %v317 = vsel %vm165, %v313, 0
    %v320 = vsel %vm165, %v315, 0
    %322 = vmatpush.bf16.xpose.msra.mxu0 0
    %323 = vmatpush.bf16.xpose.msra.mxu0 0
    %324 = vmatpush.bf16.xpose.msra.mxu0 0
    %325 = vmatpush.bf16.xpose.msra.mxu0 0
    %326 = vmatpush.bf16.xpose.msra.mxu0 0
    %327 = vmatpush.bf16.xpose.msra.mxu0 0
    %328 = vmatpush.bf16.xpose.msra.mxu0 0
    %329 = vmatpush.bf16.xpose.msra.mxu0 %v320
    %330 = vmatmul.bf16.gmra.mxu0 %v317
    %v331 = vpop.f32.mrf.mxu0
    %v332 = vadd.f32 %v156, %v331
    %v333 = vpop.f32.mrf.mxu0
    %v334 = vadd.f32 %v157, %v333
    %335 = vdwg.mxu0
    %336 = vrot.lane.b32.xlu0 %v190, 120
    %v337 = vpop.permute.xlu0 %336
    %338 = vrot.lane.b32.xlu0 %v190, 88
    %v339 = vpop.permute.xlu0 %338
    %v341 = vsel %vm165, %v337, 0
    %v344 = vsel %vm165, %v339, 0
    %346 = vmatpush.bf16.xpose.msra.mxu0 0
    %347 = vmatpush.bf16.xpose.msra.mxu0 0
    %348 = vmatpush.bf16.xpose.msra.mxu0 0
    %349 = vmatpush.bf16.xpose.msra.mxu0 0
    %350 = vmatpush.bf16.xpose.msra.mxu0 0
    %351 = vmatpush.bf16.xpose.msra.mxu0 0
    %352 = vmatpush.bf16.xpose.msra.mxu0 0
    %353 = vmatpush.bf16.xpose.msra.mxu0 %v344
    %354 = vmatmul.bf16.gmra.mxu0 %v341
    %v355 = vpop.f32.mrf.mxu0
    %v356 = vadd.f32 %v156, %v355
    %v357 = vpop.f32.mrf.mxu0
    %v358 = vadd.f32 %v157, %v357
    %359 = vdwg.mxu0
    %v360 = vsel %vm213, %v332, -inf
    %361 = vmax.xlane.f32.xlu0 %v360
    %v362 = vpop.xlane.xlu0 %361
    %v363 = vsel %vm213, %v334, -inf
    %364 = vmax.xlane.f32.xlu0 %v363
    %v365 = vpop.xlane.xlu0 %364
    %v366 = vsel %vm213, %v356, -inf
    %367 = vmax.xlane.f32.xlu0 %v366
    %v368 = vpop.xlane.xlu0 %367
    %v369 = vsel %vm213, %v358, -inf
    %370 = vmax.xlane.f32.xlu0 %v369
    %v371 = vpop.xlane.xlu0 %370
    %v372 = vsub.f32 %v332, %v362
    %v373 = vsub.f32 %v334, %v365
    %v374 = vsub.f32 %v356, %v368
    %v375 = vsub.f32 %v358, %v371
    %v376 = vmul.f32 %v372, 1.442695
    %v377 = vpow.pop %v376
    %v378 = vmul.f32 %v373, 1.442695
    %v379 = vpow.pop %v378
    %v380 = vmul.f32 %v374, 1.442695
    %v381 = vpow.pop %v380
    %v382 = vmul.f32 %v375, 1.442695
    %v383 = vpow.pop %v382
    %v384 = vsel %vm213, %v377, 0.0
    %385 = vadd.xlane.f32.xlu0 %v384
    %v386 = vpop.xlane.xlu0 %385
    %v387 = vsel %vm213, %v379, 0.0
    %388 = vadd.xlane.f32.xlu0 %v387
    %v389 = vpop.xlane.xlu0 %388
    %v390 = vsel %vm213, %v381, 0.0
    %391 = vadd.xlane.f32.xlu0 %v390
    %v392 = vpop.xlane.xlu0 %391
    %v393 = vsel %vm213, %v383, 0.0
    %394 = vadd.xlane.f32.xlu0 %v393
    %v395 = vpop.xlane.xlu0 %394
    %v396 = vrcp.pop %v386
    %v397 = vrcp.pop %v389
    %v398 = vrcp.pop %v392
    %v399 = vrcp.pop %v395
    %v400 = vmul.f32 %v377, %v396
    %v401 = vmul.f32 %v379, %v397
    %v402 = vmul.f32 %v381, %v398
    %v403 = vmul.f32 %v383, %v399
    %v404 = vpack.c.bf16 %v400, %v400
    %v405 = vpack.c.bf16 %v401, %v401
    %v406 = vpack.c.bf16 %v402, %v402
    %v407 = vpack.c.bf16 %v403, %v403
    %v410 = vunpack.c.l.b16 %v404
    %v411 = vunpack.c.l.b16 %v405
    %v412 = vpack.c.b16 %v411, %v410
    %413 = vrot.lane.b32.xlu0 %v162, 56
    %v414 = vpop.permute.xlu0 %413
    %v417 = vsel %vm213, %v412, 0
    %419 = vmatpush.bf16.msra.mxu0 0
    %420 = vmatpush.bf16.msra.mxu0 0
    %421 = vmatpush.bf16.msra.mxu0 0
    %422 = vmatpush.bf16.msra.mxu0 0
    %423 = vmatpush.bf16.msra.mxu0 0
    %424 = vmatpush.bf16.msra.mxu0 0
    %425 = vmatpush.bf16.msra.mxu0 0
    %426 = vmatpush.bf16.msra.mxu0 %v414
    %427 = vmatmul.bf16.gmra.mxu0 %v417
    %v428 = vpop.f32.mrf.mxu0
    %v429 = vadd.f32 0.0, %v428
    %v430 = vpop.f32.mrf.mxu0
    %v431 = vadd.f32 0.0, %v430
    %432 = vdwg.mxu0
    %v435 = vunpack.c.l.b16 %v406
    %v436 = vunpack.c.l.b16 %v407
    %v437 = vpack.c.b16 %v436, %v435
    %438 = vrot.lane.b32.xlu0 %v190, 56
    %v439 = vpop.permute.xlu0 %438
    %v442 = vsel %vm213, %v437, 0
    %444 = vmatpush.bf16.msra.mxu0 0
    %445 = vmatpush.bf16.msra.mxu0 0
    %446 = vmatpush.bf16.msra.mxu0 0
    %447 = vmatpush.bf16.msra.mxu0 0
    %448 = vmatpush.bf16.msra.mxu0 0
    %449 = vmatpush.bf16.msra.mxu0 0
    %450 = vmatpush.bf16.msra.mxu0 0
    %451 = vmatpush.bf16.msra.mxu0 %v439
    %452 = vmatmul.bf16.gmra.mxu0 %v442
    %v453 = vpop.f32.mrf.mxu0
    %v454 = vadd.f32 0.0, %v453
    %v455 = vpop.f32.mrf.mxu0
    %v456 = vadd.f32 0.0, %v455
    %457 = vdwg.mxu0
    %458 = vrot.lane.b32.xlu0 %v162, 112
    %v459 = vpop.permute.xlu0 %458
    %460 = vrot.lane.b32.xlu0 %v162, 80
    %v461 = vpop.permute.xlu0 %460
    %v463 = vsel %vm165, %v459, 0
    %v466 = vsel %vm165, %v461, 0
    %468 = vmatpush.bf16.xpose.msra.mxu0 0
    %469 = vmatpush.bf16.xpose.msra.mxu0 0
    %470 = vmatpush.bf16.xpose.msra.mxu0 0
    %471 = vmatpush.bf16.xpose.msra.mxu0 0
    %472 = vmatpush.bf16.xpose.msra.mxu0 0
    %473 = vmatpush.bf16.xpose.msra.mxu0 0
    %474 = vmatpush.bf16.xpose.msra.mxu0 0
    %475 = vmatpush.bf16.xpose.msra.mxu0 %v466
    %476 = vmatmul.bf16.gmra.mxu0 %v463
    %v477 = vpop.f32.mrf.mxu0
    %v478 = vadd.f32 %v156, %v477
    %v479 = vpop.f32.mrf.mxu0
    %v480 = vadd.f32 %v157, %v479
    %481 = vdwg.mxu0
    %482 = vrot.lane.b32.xlu0 %v190, 112
    %v483 = vpop.permute.xlu0 %482
    %484 = vrot.lane.b32.xlu0 %v190, 80
    %v485 = vpop.permute.xlu0 %484
    %v487 = vsel %vm165, %v483, 0
    %v490 = vsel %vm165, %v485, 0
    %492 = vmatpush.bf16.xpose.msra.mxu0 0
    %493 = vmatpush.bf16.xpose.msra.mxu0 0
    %494 = vmatpush.bf16.xpose.msra.mxu0 0
    %495 = vmatpush.bf16.xpose.msra.mxu0 0
    %496 = vmatpush.bf16.xpose.msra.mxu0 0
    %497 = vmatpush.bf16.xpose.msra.mxu0 0
    %498 = vmatpush.bf16.xpose.msra.mxu0 0
    %499 = vmatpush.bf16.xpose.msra.mxu0 %v490
    %500 = vmatmul.bf16.gmra.mxu0 %v487
    %v501 = vpop.f32.mrf.mxu0
    %v502 = vadd.f32 %v156, %v501
    %v503 = vpop.f32.mrf.mxu0
    %v504 = vadd.f32 %v157, %v503
    %505 = vdwg.mxu0
    %v506 = vsel %vm213, %v478, -inf
    %507 = vmax.xlane.f32.xlu0 %v506
    %v508 = vpop.xlane.xlu0 %507
    %v509 = vsel %vm213, %v480, -inf
    %510 = vmax.xlane.f32.xlu0 %v509
    %v511 = vpop.xlane.xlu0 %510
    %v512 = vsel %vm213, %v502, -inf
    %513 = vmax.xlane.f32.xlu0 %v512
    %v514 = vpop.xlane.xlu0 %513
    %v515 = vsel %vm213, %v504, -inf
    %516 = vmax.xlane.f32.xlu0 %v515
    %v517 = vpop.xlane.xlu0 %516
    %v518 = vsub.f32 %v478, %v508
    %v519 = vsub.f32 %v480, %v511
    %v520 = vsub.f32 %v502, %v514
    %v521 = vsub.f32 %v504, %v517
    %v522 = vmul.f32 %v518, 1.442695
    %v523 = vpow.pop %v522
    %v524 = vmul.f32 %v519, 1.442695
    %v525 = vpow.pop %v524
    %v526 = vmul.f32 %v520, 1.442695
    %v527 = vpow.pop %v526
    %v528 = vmul.f32 %v521, 1.442695
    %v529 = vpow.pop %v528
    %v530 = vsel %vm213, %v523, 0.0
    %531 = vadd.xlane.f32.xlu0 %v530
    %v532 = vpop.xlane.xlu0 %531
    %v533 = vsel %vm213, %v525, 0.0
    %534 = vadd.xlane.f32.xlu0 %v533
    %v535 = vpop.xlane.xlu0 %534
    %v536 = vsel %vm213, %v527, 0.0
    %537 = vadd.xlane.f32.xlu0 %v536
    %v538 = vpop.xlane.xlu0 %537
    %v539 = vsel %vm213, %v529, 0.0
    %540 = vadd.xlane.f32.xlu0 %v539
    %v541 = vpop.xlane.xlu0 %540
    %v542 = vrcp.pop %v532
    %v543 = vrcp.pop %v535
    %v544 = vrcp.pop %v538
    %v545 = vrcp.pop %v541
    %v546 = vmul.f32 %v523, %v542
    %v547 = vmul.f32 %v525, %v543
    %v548 = vmul.f32 %v527, %v544
    %v549 = vmul.f32 %v529, %v545
    %v550 = vpack.c.bf16 %v546, %v546
    %v551 = vpack.c.bf16 %v547, %v547
    %v552 = vpack.c.bf16 %v548, %v548
    %v553 = vpack.c.bf16 %v549, %v549
    %v556 = vunpack.c.l.b16 %v550
    %v557 = vunpack.c.l.b16 %v551
    %v558 = vpack.c.b16 %v557, %v556
    %559 = vrot.lane.b32.xlu0 %v162, 48
    %v560 = vpop.permute.xlu0 %559
    %v563 = vsel %vm213, %v558, 0
    %565 = vmatpush.bf16.msra.mxu0 0
    %566 = vmatpush.bf16.msra.mxu0 0
    %567 = vmatpush.bf16.msra.mxu0 0
    %568 = vmatpush.bf16.msra.mxu0 0
    %569 = vmatpush.bf16.msra.mxu0 0
    %570 = vmatpush.bf16.msra.mxu0 0
    %571 = vmatpush.bf16.msra.mxu0 0
    %572 = vmatpush.bf16.msra.mxu0 %v560
    %573 = vmatmul.bf16.gmra.mxu0 %v563
    %v574 = vpop.f32.mrf.mxu0
    %v575 = vadd.f32 0.0, %v574
    %v576 = vpop.f32.mrf.mxu0
    %v577 = vadd.f32 0.0, %v576
    %578 = vdwg.mxu0
    %v581 = vunpack.c.l.b16 %v552
    %v582 = vunpack.c.l.b16 %v553
    %v583 = vpack.c.b16 %v582, %v581
    %584 = vrot.lane.b32.xlu0 %v190, 48
    %v585 = vpop.permute.xlu0 %584
    %v588 = vsel %vm213, %v583, 0
    %590 = vmatpush.bf16.msra.mxu0 0
    %591 = vmatpush.bf16.msra.mxu0 0
    %592 = vmatpush.bf16.msra.mxu0 0
    %593 = vmatpush.bf16.msra.mxu0 0
    %594 = vmatpush.bf16.msra.mxu0 0
    %595 = vmatpush.bf16.msra.mxu0 0
    %596 = vmatpush.bf16.msra.mxu0 0
    %597 = vmatpush.bf16.msra.mxu0 %v585
    %598 = vmatmul.bf16.gmra.mxu0 %v588
    %v599 = vpop.f32.mrf.mxu0
    %v600 = vadd.f32 0.0, %v599
    %v601 = vpop.f32.mrf.mxu0
    %v602 = vadd.f32 0.0, %v601
    %603 = vdwg.mxu0
    %604 = vrot.lane.b32.xlu0 %v162, 104
    %v605 = vpop.permute.xlu0 %604
    %606 = vrot.lane.b32.xlu0 %v162, 72
    %v607 = vpop.permute.xlu0 %606
    %v609 = vsel %vm165, %v605, 0
    %v612 = vsel %vm165, %v607, 0
    %614 = vmatpush.bf16.xpose.msra.mxu0 0
    %615 = vmatpush.bf16.xpose.msra.mxu0 0
    %616 = vmatpush.bf16.xpose.msra.mxu0 0
    %617 = vmatpush.bf16.xpose.msra.mxu0 0
    %618 = vmatpush.bf16.xpose.msra.mxu0 0
    %619 = vmatpush.bf16.xpose.msra.mxu0 0
    %620 = vmatpush.bf16.xpose.msra.mxu0 0
    %621 = vmatpush.bf16.xpose.msra.mxu0 %v612
    %622 = vmatmul.bf16.gmra.mxu0 %v609
    %v623 = vpop.f32.mrf.mxu0
    %v624 = vadd.f32 %v156, %v623
    %v625 = vpop.f32.mrf.mxu0
    %v626 = vadd.f32 %v157, %v625
    %627 = vdwg.mxu0
    %628 = vrot.lane.b32.xlu0 %v190, 104
    %v629 = vpop.permute.xlu0 %628
    %630 = vrot.lane.b32.xlu0 %v190, 72
    %v631 = vpop.permute.xlu0 %630
    %v633 = vsel %vm165, %v629, 0
    %v636 = vsel %vm165, %v631, 0
    %638 = vmatpush.bf16.xpose.msra.mxu0 0
    %639 = vmatpush.bf16.xpose.msra.mxu0 0
    %640 = vmatpush.bf16.xpose.msra.mxu0 0
    %641 = vmatpush.bf16.xpose.msra.mxu0 0
    %642 = vmatpush.bf16.xpose.msra.mxu0 0
    %643 = vmatpush.bf16.xpose.msra.mxu0 0
    %644 = vmatpush.bf16.xpose.msra.mxu0 0
    %645 = vmatpush.bf16.xpose.msra.mxu0 %v636
    %646 = vmatmul.bf16.gmra.mxu0 %v633
    %v647 = vpop.f32.mrf.mxu0
    %v648 = vadd.f32 %v156, %v647
    %v649 = vpop.f32.mrf.mxu0
    %v650 = vadd.f32 %v157, %v649
    %651 = vdwg.mxu0
    %v652 = vsel %vm213, %v624, -inf
    %653 = vmax.xlane.f32.xlu0 %v652
    %v654 = vpop.xlane.xlu0 %653
    %v655 = vsel %vm213, %v626, -inf
    %656 = vmax.xlane.f32.xlu0 %v655
    %v657 = vpop.xlane.xlu0 %656
    %v658 = vsel %vm213, %v648, -inf
    %659 = vmax.xlane.f32.xlu0 %v658
    %v660 = vpop.xlane.xlu0 %659
    %v661 = vsel %vm213, %v650, -inf
    %662 = vmax.xlane.f32.xlu0 %v661
    %v663 = vpop.xlane.xlu0 %662
    %v664 = vsub.f32 %v624, %v654
    %v665 = vsub.f32 %v626, %v657
    %v666 = vsub.f32 %v648, %v660
    %v667 = vsub.f32 %v650, %v663
    %v668 = vmul.f32 %v664, 1.442695
    %v669 = vpow.pop %v668
    %v670 = vmul.f32 %v665, 1.442695
    %v671 = vpow.pop %v670
    %v672 = vmul.f32 %v666, 1.442695
    %v673 = vpow.pop %v672
    %v674 = vmul.f32 %v667, 1.442695
    %v675 = vpow.pop %v674
    %v676 = vsel %vm213, %v669, 0.0
    %677 = vadd.xlane.f32.xlu0 %v676
    %v678 = vpop.xlane.xlu0 %677
    %v679 = vsel %vm213, %v671, 0.0
    %680 = vadd.xlane.f32.xlu0 %v679
    %v681 = vpop.xlane.xlu0 %680
    %v682 = vsel %vm213, %v673, 0.0
    %683 = vadd.xlane.f32.xlu0 %v682
    %v684 = vpop.xlane.xlu0 %683
    %v685 = vsel %vm213, %v675, 0.0
    %686 = vadd.xlane.f32.xlu0 %v685
    %v687 = vpop.xlane.xlu0 %686
    %v688 = vrcp.pop %v678
    %v689 = vrcp.pop %v681
    %v690 = vrcp.pop %v684
    %v691 = vrcp.pop %v687
    %v692 = vmul.f32 %v669, %v688
    %v693 = vmul.f32 %v671, %v689
    %v694 = vmul.f32 %v673, %v690
    %v695 = vmul.f32 %v675, %v691
    %v696 = vpack.c.bf16 %v692, %v692
    %v697 = vpack.c.bf16 %v693, %v693
    %v698 = vpack.c.bf16 %v694, %v694
    %v699 = vpack.c.bf16 %v695, %v695
    %v702 = vunpack.c.l.b16 %v696
    %v703 = vunpack.c.l.b16 %v697
    %v704 = vpack.c.b16 %v703, %v702
    %705 = vrot.lane.b32.xlu0 %v162, 40
    %v706 = vpop.permute.xlu0 %705
    %v709 = vsel %vm213, %v704, 0
    %711 = vmatpush.bf16.msra.mxu0 0
    %712 = vmatpush.bf16.msra.mxu0 0
    %713 = vmatpush.bf16.msra.mxu0 0
    %714 = vmatpush.bf16.msra.mxu0 0
    %715 = vmatpush.bf16.msra.mxu0 0
    %716 = vmatpush.bf16.msra.mxu0 0
    %717 = vmatpush.bf16.msra.mxu0 0
    %718 = vmatpush.bf16.msra.mxu0 %v706
    %719 = vmatmul.bf16.gmra.mxu0 %v709
    %v720 = vpop.f32.mrf.mxu0
    %v721 = vadd.f32 0.0, %v720
    %v722 = vpop.f32.mrf.mxu0
    %v723 = vadd.f32 0.0, %v722
    %724 = vdwg.mxu0
    %v727 = vunpack.c.l.b16 %v698
    %v728 = vunpack.c.l.b16 %v699
    %v729 = vpack.c.b16 %v728, %v727
    %730 = vrot.lane.b32.xlu0 %v190, 40
    %v731 = vpop.permute.xlu0 %730
    %v734 = vsel %vm213, %v729, 0
    %736 = vmatpush.bf16.msra.mxu0 0
    %737 = vmatpush.bf16.msra.mxu0 0
    %738 = vmatpush.bf16.msra.mxu0 0
    %739 = vmatpush.bf16.msra.mxu0 0
    %740 = vmatpush.bf16.msra.mxu0 0
    %741 = vmatpush.bf16.msra.mxu0 0
    %742 = vmatpush.bf16.msra.mxu0 0
    %743 = vmatpush.bf16.msra.mxu0 %v731
    %744 = vmatmul.bf16.gmra.mxu0 %v734
    %v745 = vpop.f32.mrf.mxu0
    %v746 = vadd.f32 0.0, %v745
    %v747 = vpop.f32.mrf.mxu0
    %v748 = vadd.f32 0.0, %v747
    %749 = vdwg.mxu0
    %754 = vrot.lane.b32.xlu0 %v429, 8
    %v755 = vpop.permute.xlu0 %754
    %756 = vrot.lane.b32.xlu0 %v431, 8
    %v757 = vpop.permute.xlu0 %756
    %758 = vrot.lane.b32.xlu0 %v454, 8
    %v759 = vpop.permute.xlu0 %758
    %760 = vrot.lane.b32.xlu0 %v456, 8
    %v761 = vpop.permute.xlu0 %760
    %770 = vrot.lane.b32.xlu0 %v575, 16
    %v771 = vpop.permute.xlu0 %770
    %772 = vrot.lane.b32.xlu0 %v577, 16
    %v773 = vpop.permute.xlu0 %772
    %774 = vrot.lane.b32.xlu0 %v600, 16
    %v775 = vpop.permute.xlu0 %774
    %776 = vrot.lane.b32.xlu0 %v602, 16
    %v777 = vpop.permute.xlu0 %776
    %786 = vrot.lane.b32.xlu0 %v721, 24
    %v787 = vpop.permute.xlu0 %786
    %788 = vrot.lane.b32.xlu0 %v723, 24
    %v789 = vpop.permute.xlu0 %788
    %790 = vrot.lane.b32.xlu0 %v746, 24
    %v791 = vpop.permute.xlu0 %790
    %792 = vrot.lane.b32.xlu0 %v748, 24
    %v793 = vpop.permute.xlu0 %792
    %v798 = vsel %vm165, %v283, %v755
    %v799 = vsel %vm165, %v285, %v757
    %v800 = vsel %vm165, %v308, %v759
    %v801 = vsel %vm165, %v310, %v761
    %v802 = vsel %vm213, %v798, %v771
    %v803 = vsel %vm213, %v799, %v773
    %v804 = vsel %vm213, %v800, %v775
    %v805 = vsel %vm213, %v801, %v777
    %vm806 = vcmask 195584
    %v807 = vsel %vm806, %v802, %v787
    %v808 = vsel %vm806, %v803, %v789
    %v809 = vsel %vm806, %v804, %v791
    %v810 = vsel %vm806, %v805, %v793
    %v811 = vpack.c.bf16 %v808, %v807
    %v812 = vpack.c.bf16 %v810, %v809
    %v813 = vld [vmem:[%s4] sm:$0xf]
    %v814 = vld [vmem:[%s4 + $0x4] sm:$0xf]
    %v815 = vld [vmem:[%s4 + $0x8] sm:$0xf]
    %v816 = vld [vmem:[%s4 + $0xc] sm:$0xf]
    %v817 = vld [vmem:[%s5] sm:$0x1]
    %v819 = vperm.slane %v817, 0
    %v825 = vunpack.c.l.b16 %v813
    %v826 = vunpack.c.l.b16 %v814
    %v827 = vunpack.c.l.b16 %v815
    %v828 = vunpack.c.l.b16 %v816
    %v829 = vpack.c.b16 %v826, %v825
    %v830 = vpack.c.b16 %v828, %v827
    %v834 = vsel %vm33, %v811, 0
    %v837 = vsel %vm33, %v812, 0
    %839 = vmatpush.bf16.msra.mxu0 0
    %840 = vmatpush.bf16.msra.mxu0 0
    %841 = vmatpush.bf16.msra.mxu0 0
    %842 = vmatpush.bf16.msra.mxu0 0
    %843 = vmatpush.bf16.msra.mxu0 0
    %844 = vmatpush.bf16.msra.mxu0 0
    %845 = vmatpush.bf16.msra.mxu0 %v830
    %846 = vmatpush.bf16.msra.mxu0 %v829
    %847 = vmatmul.bf16.gmra.mxu0 %v834
    %v848 = vpop.f32.mrf.mxu0
    %v849 = vadd.f32 %v819, %v848
    %v850 = vpop.f32.mrf.mxu0
    %v851 = vadd.f32 %v819, %v850
    %852 = vmatmul.bf16.gmra.mxu0 %v837
    %v853 = vpop.f32.mrf.mxu0
    %v854 = vadd.f32 %v819, %v853
    %v855 = vpop.f32.mrf.mxu0
    %v856 = vadd.f32 %v819, %v855
    %857 = vdwg.mxu0
    %v858 = vadd.f32 %v849, %v25
    %v859 = vadd.f32 %v851, %v26
    %v860 = vadd.f32 %v854, %v27
    %v861 = vadd.f32 %v856, %v28
    %862 = vst.msk [vmem:[#allocation2] sm:$0xff] %vm33, %v858
    %863 = vst.msk [vmem:[#allocation2 + $0x8] sm:$0xff] %vm33, %v859
    %864 = vst.msk [vmem:[#allocation2 + $0x10] sm:$0xff] %vm33, %v860
    %865 = vst.msk [vmem:[#allocation2 + $0x18] sm:$0xff] %vm33, %v861
    // Predicated region
    $region26: #{mhsa_forward.1} parent=1 // pred_check
      _
    $region27: #{mhsa_forward.1} parent=1 // pred_check_branch
      %867 = sbr.rel (0) target = $region29
    $region28: #{mhsa_forward.1} parent=1 // pred_region
      %869 = vsyncadd [#allocation3], 0
      %s870 = sshll.u32 [#allocation2], 4
      %s871 = int_to_ptr.vmem [resolvable:$true] %s870
      %s872 = sshll.u32 %s6, 4
      %s873 = int_to_ptr.hbm [resolvable:$true] %s872
      %878 = dma.vmem_to_hbm [thread:$0]  %s871, 512, %s873, [#allocation3], 128, 128, 8
    $region29: #{mhsa_forward.1} parent=1 // pred_fallthru
      _
    // Predicated region
    $region30: #{mhsa_forward.1} parent=1 // pred_check
      _
    $region31: #{mhsa_forward.1} parent=1 // pred_check_branch
      %880 = sbr.rel (0) target = $region33
    $region32: #{mhsa_forward.1} parent=1 // pred_region
      %882 = dma.done [#allocation3], 512
    $region33: #{mhsa_forward.1} parent=1 // pred_fallthru
      _
    %883 = vsyncpa [#allocation3], 1

</llo_original>
